<compile_context>
chip_gen: v5e
topology: v5e:2x2
jax: 0.10.0
libtpu: 0.0.40
codegen_flags: <defaults>
</compile_context>

<pallas_src>
import functools

import jax
import jax.numpy as jnp
from jax.experimental import pallas as pl
from jax.experimental.pallas import tpu as pltpu

EPS = 10000.0                        # faithful to the module's (unusual) default eps
_LANE = 128
_ROW_TILE_BYTES = 4 * 1024 * 1024    # ~4 MiB per (row_tile x lane_d) block
_VMEM_LIMIT = 32 * 1024 * 1024       # 2 bufs x (in + out) x 4 MiB = 16 MiB << 32 MiB


# ---------------------------------------------------------------------------
# Kernels
# ---------------------------------------------------------------------------

def _row_norm_kernel(x_ref, alpha_ref, bias_ref, o_ref):
    """LayerNorm over the last dim; block = (TR, D), D = full feature dim."""
    x = x_ref[...].astype(jnp.float32)
    d = x.shape[-1]
    # One-pass stats: single cross-lane reduction pass, no `centered` kept live.
    s1 = jnp.sum(x, axis=-1, keepdims=True)
    s2 = jnp.sum(x * x, axis=-1, keepdims=True)
    mean = s1 * (1.0 / d)
    var = (s2 - s1 * mean) * (1.0 / (d - 1))      # torch.std: unbiased /(D-1)
    std = jnp.sqrt(jnp.maximum(var, 0.0))
    rinv = pl.reciprocal(std + EPS, approx=True)  # EUP slot, essentially free
    scale = alpha_ref[0] * rinv                   # fused per-row scalar
    shift = bias_ref[0] - mean * scale
    o_ref[...] = (x * scale + shift).astype(o_ref.dtype)


def _packed_norm_kernel(x_ref, seg_ref, alpha_ref, bias_ref, o_ref, *, d):
    """LayerNorm for D < 128 with 128 % D == 0.

    P = 128 // d logical rows are packed into each 128-lane row so loads and
    stores are lane-dense. Per-segment sums along lanes use a block-diagonal
    ones matrix on the otherwise-idle MXU (the result is already broadcast to
    every lane of the segment). `seg` is DMA'd once (constant index_map).
    """
    x = x_ref[...].astype(jnp.float32)                          # (TR, 128)
    seg = seg_ref[...]                                          # (128, 128)
    s1 = jnp.dot(x, seg, preferred_element_type=jnp.float32)    # segment sums
    s2 = jnp.dot(x * x, seg, preferred_element_type=jnp.float32)
    mean = s1 * (1.0 / d)
    var = (s2 - s1 * mean) * (1.0 / (d - 1))
    std = jnp.sqrt(jnp.maximum(var, 0.0))
    rinv = pl.reciprocal(std + EPS, approx=True)
    scale = alpha_ref[0] * rinv
    shift = bias_ref[0] - mean * scale
    o_ref[...] = (x * scale + shift).astype(o_ref.dtype)


# ---------------------------------------------------------------------------
# Wrapper
# ---------------------------------------------------------------------------

def _pick_row_tile(n_rows, lane_d, itemsize):
    """Biggest dtype-aware row tile that targets ~4 MiB blocks, >=4 grid steps."""
    sub = max(8, 32 // itemsize)               # (8,128) f32 / (16,128) bf16 / (32,128) i8
    tr = max(sub, _ROW_TILE_BYTES // (lane_d * itemsize))
    if n_rows > 4 * sub:
        # Keep >= 4 grid steps for big inputs (>= 2 per v7x TensorCore + pipelining).
        tr = min(tr, pl.cdiv(n_rows, 4))
    tr = max(sub, (tr // sub) * sub)
    if tr >= n_rows:
        return n_rows                          # full-extent block (single step)
    return tr


def _layer_norm_rows(x2, alpha, bias, kernel, *, extra=(), donate_x=False):
    """Row-tiled pallas_call over a (n_rows, lane_d) array. No padding, no slicing."""
    n_rows, lane_d = x2.shape
    tr = _pick_row_tile(n_rows, lane_d, x2.dtype.itemsize)
    # Ragged last block is clipped by Pallas; rows are independent so the
    # clipped (never-written) tail needs no wrapper-side pad or post-slice.
    grid = (pl.cdiv(n_rows, tr),)

    extra_arrays = tuple(a for a, _ in extra)
    extra_specs = [s for _, s in extra]

    return pl.pallas_call(
        kernel,
        out_shape=jax.ShapeDtypeStruct(x2.shape, x2.dtype),
        grid=grid,
        in_specs=[
            pl.BlockSpec((tr, lane_d), lambda r: (r, 0)),
            *extra_specs,
            pl.BlockSpec(memory_space=pltpu.MemorySpace.SMEM),   # alpha (1,)
            pl.BlockSpec(memory_space=pltpu.MemorySpace.SMEM),   # bias  (1,)
        ],
        out_specs=pl.BlockSpec((tr, lane_d), lambda r: (r, 0)),
        # Only donate when the caller really donates x (e.g. under jit with
        # donate_argnums); eagerly XLA would insert a defensive copy instead.
        input_output_aliases=({0: 0} if donate_x else {}),
        compiler_params=pltpu.CompilerParams(
            dimension_semantics=("parallel",),     # many steps -> both v7x TCs busy
            vmem_limit_bytes=_VMEM_LIMIT,
        ),
    )(x2, *extra_arrays, alpha, bias)


def _seg_matrix(d):
    """128x128 block-diagonal ones matrix: seg[i, j] = (i // d == j // d)."""
    idx = jnp.arange(_LANE) // d
    return (idx[:, None] == idx[None, :]).astype(jnp.float32)


def encoder_forward(x, mask, alpha, bias, layers=(), donate_x=False):
    """Encoder.forward: apply `layers` (none specified), then LayerNormalization."""
    # TODO(synk): the `layers` ModuleList is an unspecified constructor argument;
    # it is treated as empty (identity), so `mask` is unused.
    del mask
    for layer in layers:
        x = layer(x)

    B, S, D = x.shape
    n = B * S
    x2 = x.reshape(n, D)        # flatten (B, S) -> rows (free layout plumbing)

    p = _LANE // D if (D < _LANE and _LANE % D == 0) else 0
    if p and n % p == 0:
        # Lane-dense path for small D: pack 128 // D rows per 128-lane row.
        # No padding needed because n is a multiple of p (checked statically).
        packed = x2.reshape(n // p, _LANE)
        seg = _seg_matrix(D)
        seg_spec = pl.BlockSpec((_LANE, _LANE), lambda r: (0, 0))   # resident, DMA'd once
        out = _layer_norm_rows(
            packed, alpha, bias,
            functools.partial(_packed_norm_kernel, d=D),
            extra=((seg, seg_spec),), donate_x=donate_x)
        out = out.reshape(n, D)
    else:
        # D >= 128 (fully lane-dense stores when D % 128 == 0).
        # TODO(synk): D neither a multiple nor an aligned divisor of 128 falls
        # back to masked partial stores on the last-dim remainder.
        out = _layer_norm_rows(x2, alpha, bias, _row_norm_kernel, donate_x=donate_x)

    return out.reshape(B, S, D)


# ---------------------------------------------------------------------------
# Reference + test
# ---------------------------------------------------------------------------

def _reference(x, alpha, bias):
    xf = x.astype(jnp.float32)
    mean = jnp.mean(xf, axis=-1, keepdims=True)
    var = jnp.sum((xf - mean) ** 2, axis=-1, keepdims=True) / (xf.shape[-1] - 1)
    std = jnp.sqrt(var)
    return (alpha[0] * (xf - mean) / (std + EPS) + bias[0]).astype(x.dtype)


if __name__ == "__main__":
    key = jax.random.PRNGKey(0)

    # Deterministic parameters, matching nn.Parameter(torch.ones(1)).
    alpha = jnp.ones((1,), dtype=jnp.float32)
    bias = jnp.ones((1,), dtype=jnp.float32)

    cases = [
        (2, 8, 32),     # packed lane-dense path (p=4, n % p == 0), single step
        (2, 8, 128),    # D multiple of 128, full-extent block
        (2, 50, 128),   # multi-step grid with ragged (clipped) last block
        (1, 7, 32),     # small-D misalignment -> plain row fallback, no padding
    ]
    for i, (B, S, D) in enumerate(cases):
        kx = jax.random.fold_in(key, i)
        x = jax.random.normal(kx, (B, S, D), dtype=jnp.float32)
        mask = jnp.ones((B, 1, S, S), dtype=jnp.float32)   # unused (no layers)
        out = jax.block_until_ready(encoder_forward(x, mask, alpha, bias))
        ref = _reference(x, alpha, bias)
        assert out.shape == (B, S, D)
        assert jnp.allclose(out, ref, atol=1e-5, rtol=1e-5), \
            (B, S, D, float(jnp.max(jnp.abs(out - ref))))

    print("KERNEL_OK")
</pallas_src>

<mosaic_0001>
module attributes {stable_mosaic.version = 11 : i64} {
  func.func @_packed_norm_kernel(%arg0: i32, %arg1: memref<4x128xf32, #tpu.memory_space<vmem>>, %arg2: memref<128x128xf32, #tpu.memory_space<vmem>>, %arg3: memref<1xf32, #tpu.memory_space<smem>>, %arg4: memref<1xf32, #tpu.memory_space<smem>>, %arg5: memref<4x128xf32, #tpu.memory_space<vmem>>) attributes {dimension_semantics = [#tpu.dimension_semantics<parallel>], iteration_bounds = array<i64: 1>, scalar_prefetch = 0 : i64, scratch_operands = 0 : i64, tpu.core_type = #tpu.core_type<tc>, window_params = [{transform_indices = @transform_0, window_bounds = array<i64: 4, 128>}, {pipeline_mode = #tpu.pipeline_mode<synchronous>, transform_indices = @transform_1, window_bounds = array<i64: 128, 128>}, {transform_indices = @transform_2, window_bounds = array<i64: 1>}, {transform_indices = @transform_3, window_bounds = array<i64: 1>}, {transform_indices = @transform_4, window_bounds = array<i64: 4, 128>}]} {
    %c0 = arith.constant 0 : index
    %c0_0 = arith.constant 0 : index
    %0 = vector.load %arg1[%c0, %c0_0] : memref<4x128xf32, #tpu.memory_space<vmem>>, vector<4x128xf32>
    %c0_1 = arith.constant 0 : index
    %c0_2 = arith.constant 0 : index
    %1 = vector.load %arg2[%c0_1, %c0_2] : memref<128x128xf32, #tpu.memory_space<vmem>>, vector<128x128xf32>
    %cst = arith.constant dense<0.000000e+00> : vector<4x128xf32>
    %2 = tpu.matmul %0, %1, %cst {dimension_numbers = #tpu.dot_dimension_numbers<[1], [0], [0], [1], [0, 0, 1, 1], [], []>} : vector<4x128xf32>, vector<128x128xf32>, vector<4x128xf32> -> vector<4x128xf32>
    %3 = arith.mulf %0, %0 : vector<4x128xf32>
    %cst_3 = arith.constant dense<0.000000e+00> : vector<4x128xf32>
    %4 = tpu.matmul %3, %1, %cst_3 {dimension_numbers = #tpu.dot_dimension_numbers<[1], [0], [0], [1], [0, 0, 1, 1], [], []>} : vector<4x128xf32>, vector<128x128xf32>, vector<4x128xf32> -> vector<4x128xf32>
    %cst_4 = arith.constant 3.125000e-02 : f32
    %5 = vector.broadcast %cst_4 : f32 to vector<4x128xf32>
    %6 = arith.mulf %2, %5 : vector<4x128xf32>
    %7 = arith.mulf %2, %6 : vector<4x128xf32>
    %8 = arith.subf %4, %7 : vector<4x128xf32>
    %cst_5 = arith.constant 0.0322580636 : f32
    %9 = vector.broadcast %cst_5 : f32 to vector<4x128xf32>
    %10 = arith.mulf %8, %9 : vector<4x128xf32>
    %cst_6 = arith.constant 0.000000e+00 : f32
    %11 = vector.broadcast %cst_6 : f32 to vector<4x128xf32>
    %12 = arith.maximumf %10, %11 : vector<4x128xf32>
    %13 = math.sqrt %12 : vector<4x128xf32>
    %cst_7 = arith.constant 1.000000e+04 : f32
    %14 = vector.broadcast %cst_7 : f32 to vector<4x128xf32>
    %15 = arith.addf %13, %14 : vector<4x128xf32>
    %16 = tpu.reciprocal %15 {approx = true} : vector<4x128xf32> -> vector<4x128xf32>
    %c0_8 = arith.constant 0 : index
    %17 = memref.load %arg3[%c0_8] : memref<1xf32, #tpu.memory_space<smem>>
    %18 = vector.broadcast %17 : f32 to vector<4x128xf32>
    %19 = arith.mulf %18, %16 : vector<4x128xf32>
    %c0_9 = arith.constant 0 : index
    %20 = memref.load %arg4[%c0_9] : memref<1xf32, #tpu.memory_space<smem>>
    %21 = arith.mulf %6, %19 : vector<4x128xf32>
    %22 = vector.broadcast %20 : f32 to vector<4x128xf32>
    %23 = arith.subf %22, %21 : vector<4x128xf32>
    %24 = arith.mulf %0, %19 : vector<4x128xf32>
    %25 = arith.addf %24, %23 : vector<4x128xf32>
    %c0_10 = arith.constant 0 : index
    %c0_11 = arith.constant 0 : index
    %26 = vector.load %arg5[%c0_10, %c0_11] : memref<4x128xf32, #tpu.memory_space<vmem>>, vector<4x128xf32>
    tpu.vector_store %arg5[%c0_10, %c0_11], %25 {strides = array<i32>} : memref<4x128xf32, #tpu.memory_space<vmem>>, vector<4x128xf32>,
    return
  }
  func.func @transform_0(%arg0: i32) -> (i32, i32) {
    %c0_i32 = arith.constant 0 : i32
    %c0_i32_0 = arith.constant 0 : i32
    return %arg0, %c0_i32 : i32, i32
  }
  func.func @transform_1(%arg0: i32) -> (i32, i32) {
    %c0_i32 = arith.constant 0 : i32
    %c0_i32_0 = arith.constant 0 : i32
    %c0_i32_1 = arith.constant 0 : i32
    return %c0_i32, %c0_i32_0 : i32, i32
  }
  func.func @transform_2(%arg0: i32) -> i32 {
    %c0_i32 = arith.constant 0 : i32
    %c0_i32_0 = arith.constant 0 : i32
    return %c0_i32 : i32
  }
  func.func @transform_3(%arg0: i32) -> i32 {
    %c0_i32 = arith.constant 0 : i32
    %c0_i32_0 = arith.constant 0 : i32
    return %c0_i32 : i32
  }
  func.func @transform_4(%arg0: i32) -> (i32, i32) {
    %c0_i32 = arith.constant 0 : i32
    %c0_i32_0 = arith.constant 0 : i32
    return %arg0, %c0_i32 : i32, i32
  }
}

</mosaic_0001>

<llo_original>
// kernel: tpu_custom_call.1
$region0: #{tpu_custom_call.1}
  #allocation0 [shape = 'u32[]', space=smem, size = 0x4, offset = 0x4, fixed_abs, tag = 'smem constant byte address 0x4 - core index']
  #allocation1 [shape = 'u32[72,128]{1,0:T(1,128)}', space=vmem, size = 0x9000, scoped, tag = 'internal scratch']
  #allocation2 [shape = 'f32[1]{0:T(128)S(6)}', space=smem, size = 0x200, scoped, tag = 'scoped memory for tpu_custom_call.1']
  #allocation3 [shape = 'f32[1]{0:T(128)S(6)}', space=smem, size = 0x200, scoped, tag = 'scoped memory for tpu_custom_call.1']
  %s0 = inlined_call_operand.vmem [shape: f32[4,128], index: 0, kind: input, shape index: {}]
  %s1 = inlined_call_operand.hbm [shape: f32[128,128], index: 1, kind: input, shape index: {}]
  %s2 = inlined_call_operand.<no memory space> [shape: f32[1], index: 2, kind: input, shape index: {}]
  %s3 = inlined_call_operand.<no memory space> [shape: f32[1], index: 3, kind: input, shape index: {}]
  %s4 = inlined_call_operand.hbm [shape: f32[4,128], index: 4, kind: output, shape index: {}]
  %s5 = sld [smem:[#allocation0]]
  $region30: #{tpu_custom_call.1} parent=0
    _
  %s7 = ssub.s32 1, %s5
  %s8 = scalar_select 0, %s7, %s5
  %9 = sst [smem:[#allocation2]] %s2
  %10 = sst [smem:[#allocation3]] %s3
  $region1: #{tpu_custom_call.1} parent=0
    #allocation4 [shape = 'u8[65536]{0}', space=vmem, size = 0x10000, scoped, tag = 'input window, operand 1, single buffered']
    #allocation5 [shape = 's32[1]{0}', space=sflag, size = 0x4, scoped, tag = 'scoped memory for tpu_custom_call.1']
    #allocation6 [shape = 's32[1]{0}', space=sflag, size = 0x4, scoped, tag = 'scoped memory for tpu_custom_call.1']
    #allocation7 [shape = 'u8[2048]{0}', space=vmem, size = 0x800, scoped, tag = 'output window, operand 0, single buffered']
    %11 = vsyncpa [#allocation5], 0
    %12 = vsyncpa [#allocation6], 0
    // Predicated region
    $region2: #{tpu_custom_call.1} parent=1 // pred_check
      _
    $region3: #{tpu_custom_call.1} parent=1 // pred_check_branch
      %14 = sbr.rel (0) target = $region5
    $region4: #{tpu_custom_call.1} parent=1 // pred_region
      _
    $region5: #{tpu_custom_call.1} parent=1 // pred_fallthru
      _
    // Predicated region
    $region6: #{tpu_custom_call.1} parent=1 // pred_check
      _
    $region7: #{tpu_custom_call.1} parent=1 // pred_check_branch
      %16 = sbr.rel (0) target = $region9
    $region8: #{tpu_custom_call.1} parent=1 // pred_region
      %18 = vsyncadd [#allocation5], 0
      %s19 = sshll.u32 %s1, 4
      %s20 = int_to_ptr.hbm [resolvable:$true] %s19
      %s21 = sshll.u32 [#allocation4], 4
      %s22 = int_to_ptr.vmem [resolvable:$true] %s21
      %27 = dma.hbm_to_vmem [thread:$0]  %s20, 2048, %s22, [#allocation5], 128, 128, 8
    $region9: #{tpu_custom_call.1} parent=1 // pred_fallthru
      _
    // Predicated region
    $region10: #{tpu_custom_call.1} parent=1 // pred_check
      _
    $region11: #{tpu_custom_call.1} parent=1 // pred_check_branch
      %29 = sbr.rel (0) target = $region13
    $region12: #{tpu_custom_call.1} parent=1 // pred_region
      _
    $region13: #{tpu_custom_call.1} parent=1 // pred_fallthru
      _
    // Predicated region
    $region14: #{tpu_custom_call.1} parent=1 // pred_check
      _
    $region15: #{tpu_custom_call.1} parent=1 // pred_check_branch
      %31 = sbr.rel (0) target = $region17
    $region16: #{tpu_custom_call.1} parent=1 // pred_region
      _
    $region17: #{tpu_custom_call.1} parent=1 // pred_fallthru
      _
    // Predicated region
    $region18: #{tpu_custom_call.1} parent=1 // pred_check
      _
    $region19: #{tpu_custom_call.1} parent=1 // pred_check_branch
      %33 = sbr.rel (0) target = $region21
    $region20: #{tpu_custom_call.1} parent=1 // pred_region
      %35 = dma.done [#allocation5], 2048
    $region21: #{tpu_custom_call.1} parent=1 // pred_fallthru
      _
    %v36 = vld [vmem:[%s0] sm:$0xf]
    %v37 = vld [vmem:[#allocation4] sm:$0xff]
    %v38 = vld [vmem:[#allocation4 + $0x8] sm:$0xff]
    %v39 = vld [vmem:[#allocation4 + $0x10] sm:$0xff]
    %v40 = vld [vmem:[#allocation4 + $0x18] sm:$0xff]
    %v41 = vld [vmem:[#allocation4 + $0x20] sm:$0xff]
    %v42 = vld [vmem:[#allocation4 + $0x28] sm:$0xff]
    %v43 = vld [vmem:[#allocation4 + $0x30] sm:$0xff]
    %v44 = vld [vmem:[#allocation4 + $0x38] sm:$0xff]
    %v45 = vld [vmem:[#allocation4 + $0x40] sm:$0xff]
    %v46 = vld [vmem:[#allocation4 + $0x48] sm:$0xff]
    %v47 = vld [vmem:[#allocation4 + $0x50] sm:$0xff]
    %v48 = vld [vmem:[#allocation4 + $0x58] sm:$0xff]
    %v49 = vld [vmem:[#allocation4 + $0x60] sm:$0xff]
    %v50 = vld [vmem:[#allocation4 + $0x68] sm:$0xff]
    %v51 = vld [vmem:[#allocation4 + $0x70] sm:$0xff]
    %v52 = vld [vmem:[#allocation4 + $0x78] sm:$0xff]
    %53 = vmatpush.msra.mxu0 %v52
    %54 = vmatpush.msra.mxu0 %v51
    %55 = vmatpush.msra.mxu0 %v50
    %56 = vmatpush.msra.mxu0 %v49
    %57 = vmatpush.msra.mxu0 %v48
    %58 = vmatpush.msra.mxu0 %v47
    %59 = vmatpush.msra.mxu0 %v46
    %60 = vmatpush.msra.mxu0 %v45
    %61 = vmatpush.msra.mxu0 %v44
    %62 = vmatpush.msra.mxu0 %v43
    %63 = vmatpush.msra.mxu0 %v42
    %64 = vmatpush.msra.mxu0 %v41
    %65 = vmatpush.msra.mxu0 %v40
    %66 = vmatpush.msra.mxu0 %v39
    %67 = vmatpush.msra.mxu0 %v38
    %68 = vmatpush.msra.mxu0 %v37
    %69 = vmatmul.f32.gmra.mxu0 %v36
    %v70 = vpop.f32.mrf.mxu0
    %v71 = vadd.f32 0.0, %v70
    %72 = vdwg.mxu0
    %v73 = vmul.f32 %v36, %v36
    %74 = vmatpush.msra.mxu0 %v52
    %75 = vmatpush.msra.mxu0 %v51
    %76 = vmatpush.msra.mxu0 %v50
    %77 = vmatpush.msra.mxu0 %v49
    %78 = vmatpush.msra.mxu0 %v48
    %79 = vmatpush.msra.mxu0 %v47
    %80 = vmatpush.msra.mxu0 %v46
    %81 = vmatpush.msra.mxu0 %v45
    %82 = vmatpush.msra.mxu0 %v44
    %83 = vmatpush.msra.mxu0 %v43
    %84 = vmatpush.msra.mxu0 %v42
    %85 = vmatpush.msra.mxu0 %v41
    %86 = vmatpush.msra.mxu0 %v40
    %87 = vmatpush.msra.mxu0 %v39
    %88 = vmatpush.msra.mxu0 %v38
    %89 = vmatpush.msra.mxu0 %v37
    %90 = vmatmul.f32.gmra.mxu0 %v73
    %v91 = vpop.f32.mrf.mxu0
    %v92 = vadd.f32 0.0, %v91
    %93 = vdwg.mxu0
    %v94 = vmul.f32 %v71, 0.03125
    %v95 = vmul.f32 %v71, %v94
    %v96 = vsub.f32 %v92, %v95
    %v97 = vmul.f32 %v96, 0.032258064
    %v98 = vmax.f32 %v97, 0.0
    %v99 = vrsqrt.pop %v98
    %v100 = vmul.f32 %v99, %v98
    %v101 = vmul.f32 %v100, %v99
    %v102 = vmul.f32 0.5, %v101
    %v103 = vsub.f32 1.5, %v102
    %v104 = vmul.f32 %v99, %v103
    %v105 = vmul.f32 %v98, %v104
    %vm106 = vcmp.eq.f32.partialorder %v98, inf
    %v107 = vsel %vm106, %v98, %v105
    %vm108 = vcmp.eq.f32.partialorder %v98, 0.0
    %v109 = vand.u32 %v98, 2147483648
    %v110 = vsel %vm108, %v109, %v107
    %v111 = vadd.f32 %v110, 10000.0
    %v112 = vrcp.pop %v111
    %s113 = sld [smem:[#allocation2]]
    %v114 = vstv %s113
    %v115 = vmul.f32 %v114, %v112
    %s116 = sld [smem:[#allocation3]]
    %v117 = vmul.f32 %v94, %v115
    %v118 = vstv %s116
    %v119 = vsub.f32 %v118, %v117
    %v120 = vmul.f32 %v36, %v115
    %v121 = vadd.f32 %v120, %v119
    %122 = vst [vmem:[#allocation7] sm:$0xf] %v121
    // Predicated region
    $region22: #{tpu_custom_call.1} parent=1 // pred_check
      _
    $region23: #{tpu_custom_call.1} parent=1 // pred_check_branch
      %124 = sbr.rel (0) target = $region25
    $region24: #{tpu_custom_call.1} parent=1 // pred_region
      %126 = vsyncadd [#allocation6], 0
      %s128 = sshll.u32 [#allocation7], 4
      %s129 = int_to_ptr.vmem [resolvable:$true] %s128
      %s130 = sshll.u32 %s4, 4
      %s131 = int_to_ptr.hbm [resolvable:$true] %s130
      %133 = dma.vmem_to_hbm [thread:$0]  %s129, 64, %s131, [#allocation6]
    $region25: #{tpu_custom_call.1} parent=1 // pred_fallthru
      _
    // Predicated region
    $region26: #{tpu_custom_call.1} parent=1 // pred_check
      _
    $region27: #{tpu_custom_call.1} parent=1 // pred_check_branch
      %135 = sbr.rel (0) target = $region29
    $region28: #{tpu_custom_call.1} parent=1 // pred_region
      %137 = dma.done [#allocation6], 64
    $region29: #{tpu_custom_call.1} parent=1 // pred_fallthru
      _
    %138 = vsyncpa [#allocation5], 1
    %139 = vsyncpa [#allocation6], 1

</llo_original>
